<compile_context>
chip_gen: v7x
topology: tpu7x:2x2x1
jax: 0.10.0
libtpu: 0.0.40
codegen_flags: <defaults>
</compile_context>

<pallas_src>
import functools

import jax
import jax.numpy as jnp
import numpy as np
from jax.experimental import pallas as pl
from jax.experimental.pallas import tpu as pltpu


# --------------------------------- kernel -----------------------------------
def _criterion_kernel(p0_ref, p1_ref, ori_ref, pooled_ref, out_ref, *,
                      ignore_index, gamma):
  """Accumulates per-(image, W-tile) partial sums over H-tiles.

  p0_ref, p1_ref : (1, C, TH, TW) logits (native dtype), main / deepsup heads
  ori_ref        : (1, TH, TW)    int32 labels
  pooled_ref     : (1, TH, TW)    f32 k x k max-pooled weight map (precomputed)
  out_ref        : (1, 6, 8, TW)  f32 accumulator (revisited across H-tiles):
      row 0: ce_main   1: ce_ds     2: valid count
          3: ce_main*w 4: ce_ds*w   5: w         (sums over sublane groups)
  """
  h = pl.program_id(2)

  @pl.when(h == 0)
  def _():
    out_ref[...] = jnp.zeros_like(out_ref)

  p0 = p0_ref[0].astype(jnp.float32)                 # (C, TH, TW)
  p1 = p1_ref[0].astype(jnp.float32)
  ori = ori_ref[0]                                   # (TH, TW) int32
  tile_h = ori.shape[0]

  valid = ori != ignore_index
  validf = valid.astype(jnp.float32)

  cls_iota = jax.lax.broadcasted_iota(jnp.int32, p0.shape, 0)
  tsel = cls_iota == ori[None]                       # target-class selector

  # --- per-pixel CE (reduction='none', ignore_index -> 0), no one-hot -------
  m0 = jnp.max(p0, axis=0)                           # (TH, TW)
  se0 = jnp.sum(jnp.exp(p0 - m0[None]), axis=0)      # (TH, TW)
  tgt0 = jnp.sum(jnp.where(tsel, p0, 0.0), axis=0)
  ce0 = jnp.where(valid, m0 + jnp.log(se0) - tgt0, 0.0)

  m1 = jnp.max(p1, axis=0)
  se1 = jnp.sum(jnp.exp(p1 - m1[None]), axis=0)
  tgt1 = jnp.sum(jnp.where(tsel, p1, 0.0), axis=0)
  ce1 = jnp.where(valid, m1 + jnp.log(se1) - tgt1, 0.0)

  # --- GSRL top-2 softmax margin, no full softmax divide --------------------
  #   top1 - top2 = (1 - exp(p2nd - m0)) / se0;  margin = 0 on ties at max.
  is_max = p0 == m0[None]
  n_max = jnp.sum(is_max.astype(jnp.int32), axis=0)
  p2nd = jnp.max(jnp.where(is_max, -jnp.inf, p0), axis=0)
  p2nd = jnp.where(n_max > 1, m0, p2nd)
  margin = (1.0 - jnp.exp(p2nd - m0)) * pl.reciprocal(se0, approx=True)
  calib = 1.0 + gamma * (1.0 - margin)

  gw = jnp.where(valid, calib * pooled_ref[0], 0.0)

  # --- partial sums: only collapse sublane groups (pure VPU adds) -----------
  def rowsum8(x):                                    # (TH, TW) -> (8, TW)
    acc = x[0:8, :]
    for g in range(1, tile_h // 8):
      acc = acc + x[g * 8:(g + 1) * 8, :]
    return acc

  out_ref[0, 0] += rowsum8(ce0)
  out_ref[0, 1] += rowsum8(ce1)
  out_ref[0, 2] += rowsum8(validf)
  out_ref[0, 3] += rowsum8(ce0 * gw)
  out_ref[0, 4] += rowsum8(ce1 * gw)
  out_ref[0, 5] += rowsum8(gw)


# -------------------------------- wrapper ------------------------------------
def _vmem_capacity_bytes():
  try:
    return int(pltpu.get_tpu_info().vmem_capacity_bytes)
  except Exception:
    return 64 * 1024 * 1024            # conservative default (v7x per-TC VMEM)


def combined_criterion_forward(preds, labels, *, loss_types="ce,gsrl",
                               ignore_index=255, ds_weight=0.4, k=9,
                               gamma=9.0, tile_h=None, tile_w=None):
  """Pallas implementation of CombinedCriterion(loss_types).forward."""
  pred0, pred1 = preds[0], preds[1]          # native dtype (bf16 or f32) OK
  ori = labels["ori"].astype(jnp.int32)
  wmap = labels["weight"].astype(jnp.float32)
  N, C, H, W = pred0.shape
  assert pred1.shape == (N, C, H, W)
  assert k % 2 == 1, "max-pool kernel size must be odd"

  # k x k max-pool (stride 1, 'same', implicit -inf padding, same as PyTorch's
  # max_pool2d) of the weight map — hoisted out of the kernel.
  pad = k // 2
  pooled = jax.lax.reduce_window(
      wmap, -jnp.inf, jax.lax.max, (1, k, k), (1, 1, 1),
      padding=((0, 0), (pad, pad), (pad, pad)))

  # Pad spatial dims so H % 8 == 0 and W % 128 == 0 (lane-dense blocks).
  # Padded pixels carry ignore_index -> they contribute nothing to any sum.
  Hp = -(-H // 8) * 8
  Wp = -(-W // 128) * 128
  if (Hp, Wp) != (H, W):
    ph, pw = Hp - H, Wp - W
    pred0 = jnp.pad(pred0, ((0, 0), (0, 0), (0, ph), (0, pw)))
    pred1 = jnp.pad(pred1, ((0, 0), (0, 0), (0, ph), (0, pw)))
    pooled = jnp.pad(pooled, ((0, 0), (0, ph), (0, pw)))
    ori = jnp.pad(ori, ((0, 0), (0, ph), (0, pw)),
                  constant_values=ignore_index)

  itemsize = jnp.dtype(pred0.dtype).itemsize
  vmem_cap = _vmem_capacity_bytes()

  # W tile: full width by default; split the lane axis when N alone cannot
  # keep both v7x TensorCores busy (harmless on 1-TC v5e/v6e).
  if tile_w is None:
    tile_w = Wp
    if N < 2:
      for cand in (Wp // 2, Wp // 4):
        if cand >= 128 and cand % 128 == 0 and Wp % cand == 0:
          tile_w = cand
          break
  assert Wp % tile_w == 0 and tile_w % 128 == 0
  nw = Wp // tile_w

  # Per-grid-step VMEM estimate, sized against the f32 working set (cast
  # heads + several (C,TH,TW) temps), not just the raw logits blocks.
  def step_vmem(th):
    blk = C * th * tile_w
    return (2 * 2 * blk * itemsize      # two logits streams, double-buffered
            + 6 * blk * 4               # live f32 (C,TH,TW) temps
            + 2 * 2 * th * tile_w * 8   # ori + pooled, double-buffered
            + 6 * 8 * tile_w * 4)       # accumulator block

  if tile_h is None:
    budget = 0.4 * vmem_cap             # generation-aware (64 vs 128 MiB)
    tile_h = 8
    for cand in range(8, Hp + 1, 8):
      if Hp % cand == 0 and step_vmem(cand) <= budget:
        tile_h = cand
  assert Hp % tile_h == 0 and tile_h % 8 == 0
  nh = Hp // tile_h

  headroom = 8 * 1024 * 1024            # never request the full physical VMEM
  vmem_limit = int(min(max(2 * step_vmem(tile_h), 32 * 1024 * 1024),
                       min(vmem_cap - headroom, 112 * 1024 * 1024)))

  kernel = functools.partial(_criterion_kernel, ignore_index=ignore_index,
                             gamma=float(gamma))

  # TODO(synk): on 128 MiB parts (v5e/v6e) the logits streams could use
  # pipeline_mode=pl.Buffered(3) if profiling shows exposed DMA.
  partials = pl.pallas_call(
      kernel,
      out_shape=jax.ShapeDtypeStruct((N, 6, 8, Wp), jnp.float32),
      grid_spec=pltpu.PrefetchScalarGridSpec(
          num_scalar_prefetch=0,
          grid=(N, nw, nh),
          in_specs=[
              pl.BlockSpec((1, C, tile_h, tile_w),
                           lambda n, w, h: (n, 0, h, w)),
              pl.BlockSpec((1, C, tile_h, tile_w),
                           lambda n, w, h: (n, 0, h, w)),
              pl.BlockSpec((1, tile_h, tile_w), lambda n, w, h: (n, h, w)),
              pl.BlockSpec((1, tile_h, tile_w), lambda n, w, h: (n, h, w)),
          ],
          out_specs=pl.BlockSpec((1, 6, 8, tile_w),
                                 lambda n, w, h: (n, 0, 0, w)),
      ),
      compiler_params=pltpu.CompilerParams(
          dimension_semantics=("parallel", "parallel", "arbitrary"),
          vmem_limit_bytes=vmem_limit),
  )(pred0, pred1, ori, pooled)

  sums = jnp.sum(partials, axis=(2, 3))                       # (N, 6)
  ce0_sum, ce1_sum, cnt = sums[:, 0], sums[:, 1], sums[:, 2]
  s1, sds, sw = sums[:, 3], sums[:, 4], sums[:, 5]

  total = jnp.float32(0.0)
  for loss_type in loss_types.split(","):
    if loss_type == "ce":
      # CriterionDSN: batch-global mean CE (ignore_index) for both heads.
      denom = jnp.sum(cnt)
      loss = jnp.sum(ce0_sum) / denom + ds_weight * (jnp.sum(ce1_sum) / denom)
    elif loss_type == "gsrl":
      # CriterionGsrlDSN: per-image weighted-mean CE, then batch mean.
      loss1 = jnp.mean(s1 / (sw + 1e-8))
      loss_ds = jnp.mean(sds / (sw + 1e-8))
      loss = loss1 + ds_weight * loss_ds
    else:
      raise NotImplementedError(loss_type)
    total = total + loss
  # Each sub-criterion's {'loss': ...} is overwritten by the combined total,
  # exactly as in the PyTorch CombinedCriterion.forward.
  return {"loss": total}


# ---------------- pure-JAX reference (for correctness check) ----------------
def _reference_forward(preds, labels, *, ignore_index=255, ds_weight=0.4,
                       k=9, gamma=9.0):
  pred0, pred1 = preds[0].astype(jnp.float32), preds[1].astype(jnp.float32)
  ori = labels["ori"].astype(jnp.int32)
  wmap = labels["weight"].astype(jnp.float32)
  N, C, H, W = pred0.shape
  valid = ori != ignore_index
  safe = jnp.clip(ori, 0, C - 1)

  def ce_none(logits):
    logp = jax.nn.log_softmax(logits, axis=1)
    tgt = jnp.take_along_axis(logp, safe[:, None], axis=1)[:, 0]
    return jnp.where(valid, -tgt, 0.0)

  ce0, ce1 = ce_none(pred0), ce_none(pred1)
  denom = jnp.sum(valid)
  ce_loss = jnp.sum(ce0) / denom + ds_weight * (jnp.sum(ce1) / denom)

  pad = k // 2
  pooled = jax.lax.reduce_window(
      wmap, -jnp.inf, jax.lax.max, (1, k, k), (1, 1, 1),
      padding=((0, 0), (pad, pad), (pad, pad)))
  score = jax.nn.softmax(pred0, axis=1)
  top2 = jax.lax.top_k(jnp.moveaxis(score, 1, -1), 2)[0]
  calib = 1.0 + gamma * (1.0 - (top2[..., 0] - top2[..., 1]))
  gw = jnp.where(valid, calib * pooled, 0.0)
  l1 = jnp.mean(jnp.sum(ce0 * gw, (1, 2)) / (jnp.sum(gw, (1, 2)) + 1e-8))
  ld = jnp.mean(jnp.sum(ce1 * gw, (1, 2)) / (jnp.sum(gw, (1, 2)) + 1e-8))
  gsrl_loss = l1 + ds_weight * ld
  return ce_loss + gsrl_loss


if __name__ == "__main__":
  # Lane-dense last dim (W = 128); tile_h = 8 exercises the multi-tile
  # accumulation path (H // tile_h = 2 tiles per image).
  N, C, H, W = 2, 8, 16, 128
  IGNORE = 255

  key = jax.random.PRNGKey(0)
  k1, k2, k3, k4, k5 = jax.random.split(key, 5)
  pred_main = jax.random.normal(k1, (N, C, H, W), jnp.float32)
  pred_ds = jax.random.normal(k2, (N, C, H, W), jnp.float32)
  ori = jax.random.randint(k3, (N, H, W), 0, C)
  ignore_mask = jax.random.uniform(k4, (N, H, W)) < 0.1
  ori = jnp.where(ignore_mask, IGNORE, ori).astype(jnp.int32)
  wmap = jax.random.uniform(k5, (N, H, W), dtype=jnp.float32)

  preds = [pred_main, pred_ds]
  labels = {"ori": ori, "weight": wmap}

  out = combined_criterion_forward(preds, labels, loss_types="ce,gsrl",
                                   ignore_index=IGNORE, ds_weight=0.4,
                                   k=9, gamma=9.0, tile_h=8)
  loss = jax.block_until_ready(out["loss"])

  ref = jax.block_until_ready(
      _reference_forward(preds, labels, ignore_index=IGNORE, ds_weight=0.4,
                         k=9, gamma=9.0))
  # Tolerance accounts for pl.reciprocal(approx=True) in the GSRL calibration
  # weight (CE path is exact).
  np.testing.assert_allclose(np.asarray(loss), np.asarray(ref),
                             rtol=1e-3, atol=1e-3)
  print("KERNEL_OK")
</pallas_src>

<mosaic_0001>
module attributes {stable_mosaic.version = 11 : i64} {
  func.func @_criterion_kernel(%arg0: i32, %arg1: i32, %arg2: i32, %arg3: memref<1x8x8x128xf32, #tpu.memory_space<vmem>>, %arg4: memref<1x8x8x128xf32, #tpu.memory_space<vmem>>, %arg5: memref<1x8x128xi32, #tpu.memory_space<vmem>>, %arg6: memref<1x8x128xf32, #tpu.memory_space<vmem>>, %arg7: memref<1x6x8x128xf32, #tpu.memory_space<vmem>>) attributes {dimension_semantics = [#tpu.dimension_semantics<parallel>, #tpu.dimension_semantics<parallel>, #tpu.dimension_semantics<arbitrary>], iteration_bounds = array<i64: 2, 1, 2>, scalar_prefetch = 0 : i64, scratch_operands = 0 : i64, tpu.core_type = #tpu.core_type<tc>, window_params = [{transform_indices = @transform_0, window_bounds = array<i64: 1, 8, 8, 128>}, {transform_indices = @transform_1, window_bounds = array<i64: 1, 8, 8, 128>}, {transform_indices = @transform_2, window_bounds = array<i64: 1, 8, 128>}, {transform_indices = @transform_3, window_bounds = array<i64: 1, 8, 128>}, {transform_indices = @transform_4, window_bounds = array<i64: 1, 6, 8, 128>}]} {
    %c0_i32 = arith.constant 0 : i32
    %0 = arith.cmpi eq, %arg2, %c0_i32 : i32
    %1 = arith.extui %0 : i1 to i32
    %c0_i32_0 = arith.constant 0 : i32
    %2 = arith.cmpi ne, %1, %c0_i32_0 : i32
    scf.if %2 {
      %cst_74 = arith.constant 0.000000e+00 : f32
      %111 = vector.broadcast %cst_74 : f32 to vector<1x6x8x128xf32>
      %c0_75 = arith.constant 0 : index
      %c0_76 = arith.constant 0 : index
      %c0_77 = arith.constant 0 : index
      %c0_78 = arith.constant 0 : index
      %112 = vector.load %arg7[%c0_75, %c0_76, %c0_77, %c0_78] : memref<1x6x8x128xf32, #tpu.memory_space<vmem>>, vector<1x6x8x128xf32>
      tpu.vector_store %arg7[%c0_75, %c0_76, %c0_77, %c0_78], %111 {strides = array<i32>} : memref<1x6x8x128xf32, #tpu.memory_space<vmem>>, vector<1x6x8x128xf32>,
    } else {
    }
    %c0 = arith.constant 0 : index
    %c0_1 = arith.constant 0 : index
    %c0_2 = arith.constant 0 : index
    %c0_3 = arith.constant 0 : index
    %3 = vector.load %arg3[%c0, %c0_1, %c0_2, %c0_3] : memref<1x8x8x128xf32, #tpu.memory_space<vmem>>, vector<1x8x8x128xf32>
    %4 = vector.shape_cast %3 : vector<1x8x8x128xf32> to vector<8x8x128xf32>
    %c0_4 = arith.constant 0 : index
    %c0_5 = arith.constant 0 : index
    %c0_6 = arith.constant 0 : index
    %c0_7 = arith.constant 0 : index
    %5 = vector.load %arg4[%c0_4, %c0_5, %c0_6, %c0_7] : memref<1x8x8x128xf32, #tpu.memory_space<vmem>>, vector<1x8x8x128xf32>
    %6 = vector.shape_cast %5 : vector<1x8x8x128xf32> to vector<8x8x128xf32>
    %c0_8 = arith.constant 0 : index
    %c0_9 = arith.constant 0 : index
    %c0_10 = arith.constant 0 : index
    %7 = vector.load %arg5[%c0_8, %c0_9, %c0_10] : memref<1x8x128xi32, #tpu.memory_space<vmem>>, vector<1x8x128xi32>
    %8 = vector.shape_cast %7 : vector<1x8x128xi32> to vector<8x128xi32>
    %c255_i32 = arith.constant 255 : i32
    %9 = vector.broadcast %c255_i32 : i32 to vector<8x128xi32>
    %10 = arith.cmpi ne, %8, %9 : vector<8x128xi32>
    %11 = arith.extui %10 : vector<8x128xi1> to vector<8x128xi32>
    %12 = arith.sitofp %11 : vector<8x128xi32> to vector<8x128xf32>
    %13 = tpu.iota {dimensions = array<i32: 0>} : vector<8x8x128xi32>
    %14 = vector.shape_cast %8 : vector<8x128xi32> to vector<1x8x128xi32>
    %15 = vector.broadcast %14 : vector<1x8x128xi32> to vector<8x8x128xi32>
    %16 = arith.cmpi eq, %13, %15 : vector<8x8x128xi32>
    %cst = arith.constant dense<0xFF800000> : vector<8x128xf32>
    %17 = vector.multi_reduction <maximumf>, %4, %cst [0] : vector<8x8x128xf32> to vector<8x128xf32>
    %18 = vector.shape_cast %17 : vector<8x128xf32> to vector<1x8x128xf32>
    %19 = vector.broadcast %18 : vector<1x8x128xf32> to vector<8x8x128xf32>
    %20 = arith.subf %4, %19 : vector<8x8x128xf32>
    %21 = math.exp %20 : vector<8x8x128xf32>
    %cst_11 = arith.constant dense<0.000000e+00> : vector<8x128xf32>
    %22 = vector.multi_reduction <add>, %21, %cst_11 [0] : vector<8x8x128xf32> to vector<8x128xf32>
    %cst_12 = arith.constant 0.000000e+00 : f32
    %23 = vector.broadcast %cst_12 : f32 to vector<8x8x128xf32>
    %24 = arith.select %16, %4, %23 : vector<8x8x128xi1>, vector<8x8x128xf32>
    %cst_13 = arith.constant dense<0.000000e+00> : vector<8x128xf32>
    %25 = vector.multi_reduction <add>, %24, %cst_13 [0] : vector<8x8x128xf32> to vector<8x128xf32>
    %26 = math.log %22 : vector<8x128xf32>
    %27 = arith.addf %17, %26 : vector<8x128xf32>
    %28 = arith.subf %27, %25 : vector<8x128xf32>
    %cst_14 = arith.constant 0.000000e+00 : f32
    %29 = vector.broadcast %cst_14 : f32 to vector<8x128xf32>
    %30 = arith.select %10, %28, %29 : vector<8x128xi1>, vector<8x128xf32>
    %cst_15 = arith.constant dense<0xFF800000> : vector<8x128xf32>
    %31 = vector.multi_reduction <maximumf>, %6, %cst_15 [0] : vector<8x8x128xf32> to vector<8x128xf32>
    %32 = vector.shape_cast %31 : vector<8x128xf32> to vector<1x8x128xf32>
    %33 = vector.broadcast %32 : vector<1x8x128xf32> to vector<8x8x128xf32>
    %34 = arith.subf %6, %33 : vector<8x8x128xf32>
    %35 = math.exp %34 : vector<8x8x128xf32>
    %cst_16 = arith.constant dense<0.000000e+00> : vector<8x128xf32>
    %36 = vector.multi_reduction <add>, %35, %cst_16 [0] : vector<8x8x128xf32> to vector<8x128xf32>
    %cst_17 = arith.constant 0.000000e+00 : f32
    %37 = vector.broadcast %cst_17 : f32 to vector<8x8x128xf32>
    %38 = arith.select %16, %6, %37 : vector<8x8x128xi1>, vector<8x8x128xf32>
    %cst_18 = arith.constant dense<0.000000e+00> : vector<8x128xf32>
    %39 = vector.multi_reduction <add>, %38, %cst_18 [0] : vector<8x8x128xf32> to vector<8x128xf32>
    %40 = math.log %36 : vector<8x128xf32>
    %41 = arith.addf %31, %40 : vector<8x128xf32>
    %42 = arith.subf %41, %39 : vector<8x128xf32>
    %cst_19 = arith.constant 0.000000e+00 : f32
    %43 = vector.broadcast %cst_19 : f32 to vector<8x128xf32>
    %44 = arith.select %10, %42, %43 : vector<8x128xi1>, vector<8x128xf32>
    %45 = vector.shape_cast %17 : vector<8x128xf32> to vector<1x8x128xf32>
    %46 = vector.broadcast %45 : vector<1x8x128xf32> to vector<8x8x128xf32>
    %47 = arith.cmpf oeq, %4, %46 : vector<8x8x128xf32>
    %48 = arith.extui %47 : vector<8x8x128xi1> to vector<8x8x128xi32>
    %cst_20 = arith.constant dense<0> : vector<8x128xi32>
    %49 = vector.multi_reduction <add>, %48, %cst_20 [0] : vector<8x8x128xi32> to vector<8x128xi32>
    %cst_21 = arith.constant 0xFF800000 : f32
    %50 = vector.broadcast %cst_21 : f32 to vector<8x8x128xf32>
    %51 = arith.select %47, %50, %4 : vector<8x8x128xi1>, vector<8x8x128xf32>
    %cst_22 = arith.constant dense<0xFF800000> : vector<8x128xf32>
    %52 = vector.multi_reduction <maximumf>, %51, %cst_22 [0] : vector<8x8x128xf32> to vector<8x128xf32>
    %c1_i32 = arith.constant 1 : i32
    %53 = vector.broadcast %c1_i32 : i32 to vector<8x128xi32>
    %54 = arith.cmpi sgt, %49, %53 : vector<8x128xi32>
    %55 = arith.select %54, %17, %52 : vector<8x128xi1>, vector<8x128xf32>
    %56 = arith.subf %55, %17 : vector<8x128xf32>
    %57 = math.exp %56 : vector<8x128xf32>
    %cst_23 = arith.constant 1.000000e+00 : f32
    %58 = vector.broadcast %cst_23 : f32 to vector<8x128xf32>
    %59 = arith.subf %58, %57 : vector<8x128xf32>
    %60 = tpu.reciprocal %22 {approx = true} : vector<8x128xf32> -> vector<8x128xf32>
    %61 = arith.mulf %59, %60 : vector<8x128xf32>
    %cst_24 = arith.constant 1.000000e+00 : f32
    %62 = vector.broadcast %cst_24 : f32 to vector<8x128xf32>
    %63 = arith.subf %62, %61 : vector<8x128xf32>
    %cst_25 = arith.constant 9.000000e+00 : f32
    %64 = vector.broadcast %cst_25 : f32 to vector<8x128xf32>
    %65 = arith.mulf %64, %63 : vector<8x128xf32>
    %cst_26 = arith.constant 1.000000e+00 : f32
    %66 = vector.broadcast %cst_26 : f32 to vector<8x128xf32>
    %67 = arith.addf %66, %65 : vector<8x128xf32>
    %c0_27 = arith.constant 0 : index
    %c0_28 = arith.constant 0 : index
    %c0_29 = arith.constant 0 : index
    %68 = vector.load %arg6[%c0_27, %c0_28, %c0_29] : memref<1x8x128xf32, #tpu.memory_space<vmem>>, vector<1x8x128xf32>
    %69 = vector.shape_cast %68 : vector<1x8x128xf32> to vector<8x128xf32>
    %70 = arith.mulf %67, %69 : vector<8x128xf32>
    %cst_30 = arith.constant 0.000000e+00 : f32
    %71 = vector.broadcast %cst_30 : f32 to vector<8x128xf32>
    %72 = arith.select %10, %70, %71 : vector<8x128xi1>, vector<8x128xf32>
    %c0_31 = arith.constant 0 : index
    %c0_32 = arith.constant 0 : index
    %c0_33 = arith.constant 0 : index
    %c0_34 = arith.constant 0 : index
    %73 = vector.load %arg7[%c0_31, %c0_32, %c0_33, %c0_34] : memref<1x6x8x128xf32, #tpu.memory_space<vmem>>, vector<1x1x8x128xf32>
    %74 = vector.shape_cast %73 : vector<1x1x8x128xf32> to vector<8x128xf32>
    %75 = arith.addf %74, %30 : vector<8x128xf32>
    %c0_35 = arith.constant 0 : index
    %c0_36 = arith.constant 0 : index
    %c0_37 = arith.constant 0 : index
    %c0_38 = arith.constant 0 : index
    %76 = vector.load %arg7[%c0_35, %c0_36, %c0_37, %c0_38] : memref<1x6x8x128xf32, #tpu.memory_space<vmem>>, vector<1x1x8x128xf32>
    %77 = vector.shape_cast %76 : vector<1x1x8x128xf32> to vector<8x128xf32>
    %78 = vector.shape_cast %75 : vector<8x128xf32> to vector<1x1x8x128xf32>
    tpu.vector_store %arg7[%c0_35, %c0_36, %c0_37, %c0_38], %78 {strides = array<i32>} : memref<1x6x8x128xf32, #tpu.memory_space<vmem>>, vector<1x1x8x128xf32>,
    %c0_39 = arith.constant 0 : index
    %c1 = arith.constant 1 : index
    %c0_40 = arith.constant 0 : index
    %c0_41 = arith.constant 0 : index
    %79 = vector.load %arg7[%c0_39, %c1, %c0_40, %c0_41] : memref<1x6x8x128xf32, #tpu.memory_space<vmem>>, vector<1x1x8x128xf32>
    %80 = vector.shape_cast %79 : vector<1x1x8x128xf32> to vector<8x128xf32>
    %81 = arith.addf %80, %44 : vector<8x128xf32>
    %c0_42 = arith.constant 0 : index
    %c1_43 = arith.constant 1 : index
    %c0_44 = arith.constant 0 : index
    %c0_45 = arith.constant 0 : index
    %82 = vector.load %arg7[%c0_42, %c1_43, %c0_44, %c0_45] : memref<1x6x8x128xf32, #tpu.memory_space<vmem>>, vector<1x1x8x128xf32>
    %83 = vector.shape_cast %82 : vector<1x1x8x128xf32> to vector<8x128xf32>
    %84 = vector.shape_cast %81 : vector<8x128xf32> to vector<1x1x8x128xf32>
    tpu.vector_store %arg7[%c0_42, %c1_43, %c0_44, %c0_45], %84 {strides = array<i32>} : memref<1x6x8x128xf32, #tpu.memory_space<vmem>>, vector<1x1x8x128xf32>,
    %c0_46 = arith.constant 0 : index
    %c2 = arith.constant 2 : index
    %c0_47 = arith.constant 0 : index
    %c0_48 = arith.constant 0 : index
    %85 = vector.load %arg7[%c0_46, %c2, %c0_47, %c0_48] : memref<1x6x8x128xf32, #tpu.memory_space<vmem>>, vector<1x1x8x128xf32>
    %86 = vector.shape_cast %85 : vector<1x1x8x128xf32> to vector<8x128xf32>
    %87 = arith.addf %86, %12 : vector<8x128xf32>
    %c0_49 = arith.constant 0 : index
    %c2_50 = arith.constant 2 : index
    %c0_51 = arith.constant 0 : index
    %c0_52 = arith.constant 0 : index
    %88 = vector.load %arg7[%c0_49, %c2_50, %c0_51, %c0_52] : memref<1x6x8x128xf32, #tpu.memory_space<vmem>>, vector<1x1x8x128xf32>
    %89 = vector.shape_cast %88 : vector<1x1x8x128xf32> to vector<8x128xf32>
    %90 = vector.shape_cast %87 : vector<8x128xf32> to vector<1x1x8x128xf32>
    tpu.vector_store %arg7[%c0_49, %c2_50, %c0_51, %c0_52], %90 {strides = array<i32>} : memref<1x6x8x128xf32, #tpu.memory_space<vmem>>, vector<1x1x8x128xf32>,
    %c0_53 = arith.constant 0 : index
    %c3 = arith.constant 3 : index
    %c0_54 = arith.constant 0 : index
    %c0_55 = arith.constant 0 : index
    %91 = vector.load %arg7[%c0_53, %c3, %c0_54, %c0_55] : memref<1x6x8x128xf32, #tpu.memory_space<vmem>>, vector<1x1x8x128xf32>
    %92 = vector.shape_cast %91 : vector<1x1x8x128xf32> to vector<8x128xf32>
    %93 = arith.mulf %30, %72 : vector<8x128xf32>
    %94 = arith.addf %92, %93 : vector<8x128xf32>
    %c0_56 = arith.constant 0 : index
    %c3_57 = arith.constant 3 : index
    %c0_58 = arith.constant 0 : index
    %c0_59 = arith.constant 0 : index
    %95 = vector.load %arg7[%c0_56, %c3_57, %c0_58, %c0_59] : memref<1x6x8x128xf32, #tpu.memory_space<vmem>>, vector<1x1x8x128xf32>
    %96 = vector.shape_cast %95 : vector<1x1x8x128xf32> to vector<8x128xf32>
    %97 = vector.shape_cast %94 : vector<8x128xf32> to vector<1x1x8x128xf32>
    tpu.vector_store %arg7[%c0_56, %c3_57, %c0_58, %c0_59], %97 {strides = array<i32>} : memref<1x6x8x128xf32, #tpu.memory_space<vmem>>, vector<1x1x8x128xf32>,
    %c0_60 = arith.constant 0 : index
    %c4 = arith.constant 4 : index
    %c0_61 = arith.constant 0 : index
    %c0_62 = arith.constant 0 : index
    %98 = vector.load %arg7[%c0_60, %c4, %c0_61, %c0_62] : memref<1x6x8x128xf32, #tpu.memory_space<vmem>>, vector<1x1x8x128xf32>
    %99 = vector.shape_cast %98 : vector<1x1x8x128xf32> to vector<8x128xf32>
    %100 = arith.mulf %44, %72 : vector<8x128xf32>
    %101 = arith.addf %99, %100 : vector<8x128xf32>
    %c0_63 = arith.constant 0 : index
    %c4_64 = arith.constant 4 : index
    %c0_65 = arith.constant 0 : index
    %c0_66 = arith.constant 0 : index
    %102 = vector.load %arg7[%c0_63, %c4_64, %c0_65, %c0_66] : memref<1x6x8x128xf32, #tpu.memory_space<vmem>>, vector<1x1x8x128xf32>
    %103 = vector.shape_cast %102 : vector<1x1x8x128xf32> to vector<8x128xf32>
    %104 = vector.shape_cast %101 : vector<8x128xf32> to vector<1x1x8x128xf32>
    tpu.vector_store %arg7[%c0_63, %c4_64, %c0_65, %c0_66], %104 {strides = array<i32>} : memref<1x6x8x128xf32, #tpu.memory_space<vmem>>, vector<1x1x8x128xf32>,
    %c0_67 = arith.constant 0 : index
    %c5 = arith.constant 5 : index
    %c0_68 = arith.constant 0 : index
    %c0_69 = arith.constant 0 : index
    %105 = vector.load %arg7[%c0_67, %c5, %c0_68, %c0_69] : memref<1x6x8x128xf32, #tpu.memory_space<vmem>>, vector<1x1x8x128xf32>
    %106 = vector.shape_cast %105 : vector<1x1x8x128xf32> to vector<8x128xf32>
    %107 = arith.addf %106, %72 : vector<8x128xf32>
    %c0_70 = arith.constant 0 : index
    %c5_71 = arith.constant 5 : index
    %c0_72 = arith.constant 0 : index
    %c0_73 = arith.constant 0 : index
    %108 = vector.load %arg7[%c0_70, %c5_71, %c0_72, %c0_73] : memref<1x6x8x128xf32, #tpu.memory_space<vmem>>, vector<1x1x8x128xf32>
    %109 = vector.shape_cast %108 : vector<1x1x8x128xf32> to vector<8x128xf32>
    %110 = vector.shape_cast %107 : vector<8x128xf32> to vector<1x1x8x128xf32>
    tpu.vector_store %arg7[%c0_70, %c5_71, %c0_72, %c0_73], %110 {strides = array<i32>} : memref<1x6x8x128xf32, #tpu.memory_space<vmem>>, vector<1x1x8x128xf32>,
    return
  }
  func.func @transform_0(%arg0: i32, %arg1: i32, %arg2: i32) -> (i32, i32, i32, i32) {
    %c0_i32 = arith.constant 0 : i32
    %c0_i32_0 = arith.constant 0 : i32
    return %arg0, %c0_i32, %arg2, %arg1 : i32, i32, i32, i32
  }
  func.func @transform_1(%arg0: i32, %arg1: i32, %arg2: i32) -> (i32, i32, i32, i32) {
    %c0_i32 = arith.constant 0 : i32
    %c0_i32_0 = arith.constant 0 : i32
    return %arg0, %c0_i32, %arg2, %arg1 : i32, i32, i32, i32
  }
  func.func @transform_2(%arg0: i32, %arg1: i32, %arg2: i32) -> (i32, i32, i32) {
    %c0_i32 = arith.constant 0 : i32
    return %arg0, %arg2, %arg1 : i32, i32, i32
  }
  func.func @transform_3(%arg0: i32, %arg1: i32, %arg2: i32) -> (i32, i32, i32) {
    %c0_i32 = arith.constant 0 : i32
    return %arg0, %arg2, %arg1 : i32, i32, i32
  }
  func.func @transform_4(%arg0: i32, %arg1: i32, %arg2: i32) -> (i32, i32, i32, i32) {
    %c0_i32 = arith.constant 0 : i32
    %c0_i32_0 = arith.constant 0 : i32
    %c0_i32_1 = arith.constant 0 : i32
    return %arg0, %c0_i32, %c0_i32_0, %arg1 : i32, i32, i32, i32
  }
}

</mosaic_0001>

<llo_original>
// kernel: tpu_custom_call.1
$region0: #{tpu_custom_call.1}
  #allocation0 [shape = 'u32[]', space=smem, size = 0x4, offset = 0x4, fixed_abs, tag = 'smem constant byte address 0x4 - core index']
  #allocation1 [shape = 'u32[144,128]{1,0:T(1,128)}', space=vmem, size = 0x12000, scoped, tag = 'internal scratch']
  %s0 = inlined_call_operand.hbm [shape: f32[2,8,16,128], index: 0, kind: input, shape index: {}]
  %s1 = inlined_call_operand.hbm [shape: f32[2,8,16,128], index: 1, kind: input, shape index: {}]
  %s2 = inlined_call_operand.hbm [shape: s32[2,16,128], index: 2, kind: input, shape index: {}]
  %s3 = inlined_call_operand.hbm [shape: f32[2,16,128], index: 3, kind: input, shape index: {}]
  %s4 = inlined_call_operand.hbm [shape: f32[2,6,8,128], index: 4, kind: output, shape index: {}]
  %s5 = sld [smem:[#allocation0]]
  $region69: #{tpu_custom_call.1} parent=0
    _
  %s7 = ssub.s32 1, %s5
  %s8 = scalar_select 0, %s7, %s5
  $region1: #{tpu_custom_call.1} parent=0
    #allocation2 [shape = 'u8[65536]{0}', space=vmem, size = 0x10000, scoped, tag = 'input window, operand 0']
    #allocation3 [shape = 's32[2]{0}', space=sflag, size = 0x8, scoped, tag = 'scoped memory for tpu_custom_call.1']
    #allocation4 [shape = 's32[2]{0}', space=sflag, size = 0x8, scoped, tag = 'scoped memory for tpu_custom_call.1']
    #allocation5 [shape = 'u8[65536]{0}', space=vmem, size = 0x10000, scoped, tag = 'input window, operand 1']
    #allocation6 [shape = 's32[2]{0}', space=sflag, size = 0x8, scoped, tag = 'scoped memory for tpu_custom_call.1']
    #allocation7 [shape = 'u8[8192]{0}', space=vmem, size = 0x2000, scoped, tag = 'input window, operand 2']
    #allocation8 [shape = 'u8[8192]{0}', space=vmem, size = 0x2000, scoped, tag = 'input window, operand 3']
    #allocation9 [shape = 's32[2]{0}', space=sflag, size = 0x8, scoped, tag = 'scoped memory for tpu_custom_call.1']
    #allocation10 [shape = 'u8[49152]{0}', space=vmem, size = 0xc000, scoped, tag = 'output window, operand 0']
    %9 = vsyncpa [#allocation3], 0
    %s10 = scalar_lea.sflag [#allocation3], 1
    %11 = vsyncpa %s10, 0
    %12 = vsyncpa [#allocation6], 0
    %s13 = scalar_lea.sflag [#allocation6], 1
    %14 = vsyncpa %s13, 0
    %15 = vsyncpa [#allocation9], 0
    %s16 = scalar_lea.sflag [#allocation9], 1
    %17 = vsyncpa %s16, 0
    %18 = vsyncpa [#allocation4], 0
    %s19 = scalar_lea.sflag [#allocation4], 1
    %20 = vsyncpa %s19, 0
    loop: start=0, step=1, limit=6
    $region2: #{tpu_custom_call.1} parent=1 // loop_pre_header
      _
    $region3: #{tpu_custom_call.1} parent=1 // loop_header
      %s22 = sphi 0, %s26
      %p23 = scmp.ge.s32.totalorder %s22, 6
      %s29 = sphi 0, %s48
      %s30 = sphi 0, %s44
      %s31 = sphi 0, %s40
      %s32 = sphi 0, %s29
      %s33 = sphi 0, %s30
      %s34 = sphi 0, %s31
      %s35 = sphi 0, %s32
      %s36 = sphi 0, %s33
      %s37 = sphi 0, %s34
      %s55 = sphi 0, %s57
      %s58 = sphi 0, %s55
      %s59 = sphi 0, %s58
      %s75 = sphi 0, %s59
      %s85 = sphi 0, %s87
      %s88 = sphi 0, %s85
      %s89 = sphi 0, %s88
      %s105 = sphi 0, %s89
      %s115 = sphi 0, %s117
      %s118 = sphi 0, %s115
      %s119 = sphi 0, %s118
      %s135 = sphi 0, %s119
      %s145 = sphi 0, %s147
      %s148 = sphi 0, %s145
      %s149 = sphi 0, %s148
      %s165 = sphi 0, %s149
      %s173 = sphi 0, %s175
      %s176 = sphi 0, %s173
      %s177 = sphi 0, %s176
      %s193 = sphi 0, %s177
    $region4: #{tpu_custom_call.1} parent=1 // loop_header_branch
      %25 = sbr.rel (%p23) target = $region8
    $region5: #{tpu_custom_call.1} parent=1 // loop_body
      %s27 = ssub.s32 %s22, 1
      %s28 = ssub.s32 %s22, 2
      %s38 = sadd.s32 1, %s31
      %p39 = scmp.ge.s32.totalorder %s38, 2
      %s40 = scalar_select %p39, 0, %s38
      %s41 = sadd.s32 1, %s30
      %s42 = scalar_select %p39, %s41, %s30
      %p43 = scmp.ge.s32.totalorder %s42, 1
      %s44 = scalar_select %p43, 0, %s42
      %s45 = sadd.s32 1, %s29
      %s46 = scalar_select %p43, %s45, %s29
      %p47 = scmp.ge.s32.totalorder %s46, 2
      %s48 = scalar_select %p47, 0, %s46
      %s49 = ssub.s32 %s29, %s48
      %s50 = ssub.s32 %s31, %s40
      %s51 = sor.u32 %s49, %s50
      %s52 = ssub.s32 %s30, %s44
      %s53 = sor.u32 %s51, %s52
      %p54 = scmp.eq.s32.totalorder %s53, 0
      %s56 = sadd.s32 %s55, 1
      %s57 = scalar_select %p54, %s55, %s56
      %p60 = pneg %p54
      %p61 = scmp.eq.s32.totalorder %s22, 3
      %p62 = por %p60, %p61
      %p63 = scmp.ne.s32.totalorder %s55, %s58
      %p64 = scmp.eq.s32.totalorder %s22, 0
      %p65 = por %p63, %p64
      %p66 = scmp.ne.s32.totalorder %s55, %s58
      %p67 = scmp.eq.s32.totalorder %s27, 3
      %p68 = por %p66, %p67
      %p69 = scmp.ne.s32.totalorder %s58, %s59
      %p70 = scmp.eq.s32.totalorder %s27, 0
      %p71 = por %p69, %p70
      %p72 = scmp.ne.s32.totalorder %s58, %s59
      %p73 = scmp.eq.s32.totalorder %s28, 3
      %p74 = por %p72, %p73
      %p76 = scmp.ne.s32.totalorder %s59, %s75
      %p77 = scmp.eq.s32.totalorder %s28, 0
      %p78 = por %p76, %p77
      %s79 = ssub.s32 %s29, %s48
      %s80 = ssub.s32 %s31, %s40
      %s81 = sor.u32 %s79, %s80
      %s82 = ssub.s32 %s30, %s44
      %s83 = sor.u32 %s81, %s82
      %p84 = scmp.eq.s32.totalorder %s83, 0
      %s86 = sadd.s32 %s85, 1
      %s87 = scalar_select %p84, %s85, %s86
      %p90 = pneg %p84
      %p91 = scmp.eq.s32.totalorder %s22, 3
      %p92 = por %p90, %p91
      %p93 = scmp.ne.s32.totalorder %s85, %s88
      %p94 = scmp.eq.s32.totalorder %s22, 0
      %p95 = por %p93, %p94
      %p96 = scmp.ne.s32.totalorder %s85, %s88
      %p97 = scmp.eq.s32.totalorder %s27, 3
      %p98 = por %p96, %p97
      %p99 = scmp.ne.s32.totalorder %s88, %s89
      %p100 = scmp.eq.s32.totalorder %s27, 0
      %p101 = por %p99, %p100
      %p102 = scmp.ne.s32.totalorder %s88, %s89
      %p103 = scmp.eq.s32.totalorder %s28, 3
      %p104 = por %p102, %p103
      %p106 = scmp.ne.s32.totalorder %s89, %s105
      %p107 = scmp.eq.s32.totalorder %s28, 0
      %p108 = por %p106, %p107
      %s109 = ssub.s32 %s29, %s48
      %s110 = ssub.s32 %s31, %s40
      %s111 = sor.u32 %s109, %s110
      %s112 = ssub.s32 %s30, %s44
      %s113 = sor.u32 %s111, %s112
      %p114 = scmp.eq.s32.totalorder %s113, 0
      %s116 = sadd.s32 %s115, 1
      %s117 = scalar_select %p114, %s115, %s116
      %p120 = pneg %p114
      %p121 = scmp.eq.s32.totalorder %s22, 3
      %p122 = por %p120, %p121
      %p123 = scmp.ne.s32.totalorder %s115, %s118
      %p124 = scmp.eq.s32.totalorder %s22, 0
      %p125 = por %p123, %p124
      %p126 = scmp.ne.s32.totalorder %s115, %s118
      %p127 = scmp.eq.s32.totalorder %s27, 3
      %p128 = por %p126, %p127
      %p129 = scmp.ne.s32.totalorder %s118, %s119
      %p130 = scmp.eq.s32.totalorder %s27, 0
      %p131 = por %p129, %p130
      %p132 = scmp.ne.s32.totalorder %s118, %s119
      %p133 = scmp.eq.s32.totalorder %s28, 3
      %p134 = por %p132, %p133
      %p136 = scmp.ne.s32.totalorder %s119, %s135
      %p137 = scmp.eq.s32.totalorder %s28, 0
      %p138 = por %p136, %p137
      %s139 = ssub.s32 %s29, %s48
      %s140 = ssub.s32 %s31, %s40
      %s141 = sor.u32 %s139, %s140
      %s142 = ssub.s32 %s30, %s44
      %s143 = sor.u32 %s141, %s142
      %p144 = scmp.eq.s32.totalorder %s143, 0
      %s146 = sadd.s32 %s145, 1
      %s147 = scalar_select %p144, %s145, %s146
      %p150 = pneg %p144
      %p151 = scmp.eq.s32.totalorder %s22, 3
      %p152 = por %p150, %p151
      %p153 = scmp.ne.s32.totalorder %s145, %s148
      %p154 = scmp.eq.s32.totalorder %s22, 0
      %p155 = por %p153, %p154
      %p156 = scmp.ne.s32.totalorder %s145, %s148
      %p157 = scmp.eq.s32.totalorder %s27, 3
      %p158 = por %p156, %p157
      %p159 = scmp.ne.s32.totalorder %s148, %s149
      %p160 = scmp.eq.s32.totalorder %s27, 0
      %p161 = por %p159, %p160
      %p162 = scmp.ne.s32.totalorder %s148, %s149
      %p163 = scmp.eq.s32.totalorder %s28, 3
      %p164 = por %p162, %p163
      %p166 = scmp.ne.s32.totalorder %s149, %s165
      %p167 = scmp.eq.s32.totalorder %s28, 0
      %p168 = por %p166, %p167
      %s169 = ssub.s32 %s29, %s48
      %s170 = ssub.s32 %s30, %s44
      %s171 = sor.u32 %s169, %s170
      %p172 = scmp.eq.s32.totalorder %s171, 0
      %s174 = sadd.s32 %s173, 1
      %s175 = scalar_select %p172, %s173, %s174
      %p178 = pneg %p172
      %p179 = scmp.eq.s32.totalorder %s22, 3
      %p180 = por %p178, %p179
      %p181 = scmp.ne.s32.totalorder %s173, %s176
      %p182 = scmp.eq.s32.totalorder %s22, 0
      %p183 = por %p181, %p182
      %p184 = scmp.ne.s32.totalorder %s173, %s176
      %p185 = scmp.eq.s32.totalorder %s27, 3
      %p186 = por %p184, %p185
      %p187 = scmp.ne.s32.totalorder %s176, %s177
      %p188 = scmp.eq.s32.totalorder %s27, 0
      %p189 = por %p187, %p188
      %p190 = scmp.ne.s32.totalorder %s176, %s177
      %p191 = scmp.eq.s32.totalorder %s28, 3
      %p192 = por %p190, %p191
      %p194 = scmp.ne.s32.totalorder %s177, %s193
      %p195 = scmp.eq.s32.totalorder %s28, 0
      %p196 = por %p194, %p195
      %p197 = scmp.le.s32.totalorder 1, %s22
      %p198 = scmp.lt.s32.totalorder %s22, 5
      %p199 = pnand %p197, %p198
      %p200 = pneg %p199
      // Predicated region
      $region9: #{tpu_custom_call.1} parent=5 // pred_check
        _
      $region10: #{tpu_custom_call.1} parent=5 // pred_check_branch
        %202 = sbr.rel (%p199) target = $region12
      $region11: #{tpu_custom_call.1} parent=5 // pred_region
        %s203 = ssub.s32 %s22, 1
      $region12: #{tpu_custom_call.1} parent=5 // pred_fallthru
        _
      %p204 = scmp.lt.s32.totalorder %s22, 4
      // Predicated region
      $region13: #{tpu_custom_call.1} parent=5 // pred_check
        %p205 = pneg %p204
      $region14: #{tpu_custom_call.1} parent=5 // pred_check_branch
        %207 = sbr.rel (%p205) target = $region16
      $region15: #{tpu_custom_call.1} parent=5 // pred_region
        // Predicated region
        $region17: #{tpu_custom_call.1} parent=15 // pred_check
          %p208 = pneg %p65
        $region18: #{tpu_custom_call.1} parent=15 // pred_check_branch
          %210 = sbr.rel (%p208) target = $region20
        $region19: #{tpu_custom_call.1} parent=15 // pred_region
          %s211 = sand.u32 %s55, 1
          %s212 = scalar_lea.sflag [#allocation3], %s211
          %s213 = sand.u32 %s55, 1
          %s214 = smul.addr %s213, 64
          %s215 = scalar_lea.vmem [#allocation2], %s214
          %s217 = ssub.s32 1024, 1024
          %218 = vsyncadd %s212, %s217
          %s219 = sadd.s32 %s30, %s31
          %s220 = smul.addr %s29, 16
          %s221 = sadd.s32 %s219, %s220
          %s222 = smul.addr %s221, 128
          %s223 = scalar_lea.hbm %s0, %s222
          %s224 = sshll.u32 %s215, 4
          %s225 = int_to_ptr.vmem [resolvable:$true] %s224
          %230 = dma.hbm_to_vmem [thread:$0]  %s223, 1024, %s225, %s212, 256, 128, 8
        $region20: #{tpu_custom_call.1} parent=15 // pred_fallthru
          _
        // Predicated region
        $region21: #{tpu_custom_call.1} parent=15 // pred_check
          %p231 = pneg %p95
        $region22: #{tpu_custom_call.1} parent=15 // pred_check_branch
          %233 = sbr.rel (%p231) target = $region24
        $region23: #{tpu_custom_call.1} parent=15 // pred_region
          %s234 = sand.u32 %s22, 1
          %s235 = scalar_lea.sflag [#allocation6], %s234
          %s236 = sand.u32 %s85, 1
          %s237 = smul.addr %s236, 64
          %s238 = scalar_lea.vmem [#allocation5], %s237
          %s240 = ssub.s32 1024, 1024
          %241 = vsyncadd %s235, %s240
          %s242 = sadd.s32 %s30, %s31
          %s243 = smul.addr %s29, 16
          %s244 = sadd.s32 %s242, %s243
          %s245 = smul.addr %s244, 128
          %s246 = scalar_lea.hbm %s1, %s245
          %s247 = sshll.u32 %s238, 4
          %s248 = int_to_ptr.vmem [resolvable:$true] %s247
          %253 = dma.hbm_to_vmem [thread:$0]  %s246, 1024, %s248, %s235, 256, 128, 8
        $region24: #{tpu_custom_call.1} parent=15 // pred_fallthru
          _
        // Predicated region
        $region25: #{tpu_custom_call.1} parent=15 // pred_check
          %p254 = pneg %p125
        $region26: #{tpu_custom_call.1} parent=15 // pred_check_branch
          %256 = sbr.rel (%p254) target = $region28
        $region27: #{tpu_custom_call.1} parent=15 // pred_region
          %s257 = sand.u32 %s22, 1
          %s258 = scalar_lea.sflag [#allocation6], %s257
          %s259 = sand.u32 %s115, 1
          %s260 = smul.addr %s259, 8
          %s261 = scalar_lea.vmem [#allocation7], %s260
          %s263 = ssub.s32 128, 128
          %264 = vsyncadd %s258, %s263
          %s265 = sadd.s32 %s30, %s31
          %s266 = smul.addr %s29, 2
          %s267 = sadd.s32 %s265, %s266
          %s268 = smul.addr %s267, 128
          %s269 = scalar_lea.hbm %s2, %s268
          %s271 = sshll.u32 %s261, 4
          %s272 = int_to_ptr.vmem [resolvable:$true] %s271
          %274 = dma.hbm_to_vmem [thread:$0]  %s269, 128, %s272, %s258
        $region28: #{tpu_custom_call.1} parent=15 // pred_fallthru
          _
        // Predicated region
        $region29: #{tpu_custom_call.1} parent=15 // pred_check
          %p275 = pneg %p155
        $region30: #{tpu_custom_call.1} parent=15 // pred_check_branch
          %277 = sbr.rel (%p275) target = $region32
        $region31: #{tpu_custom_call.1} parent=15 // pred_region
          %s278 = sand.u32 %s145, 1
          %s279 = scalar_lea.sflag [#allocation9], %s278
          %s280 = sand.u32 %s145, 1
          %s281 = smul.addr %s280, 8
          %s282 = scalar_lea.vmem [#allocation8], %s281
          %s284 = ssub.s32 128, 128
          %285 = vsyncadd %s279, %s284
          %s286 = sadd.s32 %s30, %s31
          %s287 = smul.addr %s29, 2
          %s288 = sadd.s32 %s286, %s287
          %s289 = smul.addr %s288, 128
          %s290 = scalar_lea.hbm %s3, %s289
          %s292 = sshll.u32 %s282, 4
          %s293 = int_to_ptr.vmem [resolvable:$true] %s292
          %295 = dma.hbm_to_vmem [thread:$0]  %s290, 128, %s293, %s279
        $region32: #{tpu_custom_call.1} parent=15 // pred_fallthru
          _
      $region16: #{tpu_custom_call.1} parent=5 // pred_fallthru
        _
      %p296 = scmp.le.s32.totalorder 1, %s22
      %p297 = scmp.lt.s32.totalorder %s22, 5
      %p298 = pnand %p296, %p297
      %p299 = pneg %p298
      // Predicated region
      $region33: #{tpu_custom_call.1} parent=5 // pred_check
        _
      $region34: #{tpu_custom_call.1} parent=5 // pred_check_branch
        %301 = sbr.rel (%p298) target = $region36
      $region35: #{tpu_custom_call.1} parent=5 // pred_region
        %s302 = ssub.s32 %s22, 1
        %s303 = sand.u32 %s58, 1
        %s304 = scalar_lea.sflag [#allocation3], %s303
        %s305 = sand.u32 %s58, 1
        %s306 = smul.addr %s305, 64
        %s307 = scalar_lea.vmem [#allocation2], %s306
        // Predicated region
        $region37: #{tpu_custom_call.1} parent=35 // pred_check
          %p308 = pneg %p71
        $region38: #{tpu_custom_call.1} parent=35 // pred_check_branch
          %310 = sbr.rel (%p308) target = $region40
        $region39: #{tpu_custom_call.1} parent=35 // pred_region
          %311 = dma.done %s304, 1024
        $region40: #{tpu_custom_call.1} parent=35 // pred_fallthru
          _
        %s312 = sand.u32 %s27, 1
        %s313 = scalar_lea.sflag [#allocation6], %s312
        %s314 = sand.u32 %s88, 1
        %s315 = smul.addr %s314, 64
        %s316 = scalar_lea.vmem [#allocation5], %s315
        // Predicated region
        $region41: #{tpu_custom_call.1} parent=35 // pred_check
          %p317 = pneg %p101
        $region42: #{tpu_custom_call.1} parent=35 // pred_check_branch
          %319 = sbr.rel (%p317) target = $region44
        $region43: #{tpu_custom_call.1} parent=35 // pred_region
          %320 = dma.done %s313, 1024
        $region44: #{tpu_custom_call.1} parent=35 // pred_fallthru
          _
        %s321 = sand.u32 %s27, 1
        %s322 = scalar_lea.sflag [#allocation6], %s321
        %s323 = sand.u32 %s118, 1
        %s324 = smul.addr %s323, 8
        %s325 = scalar_lea.vmem [#allocation7], %s324
        // Predicated region
        $region45: #{tpu_custom_call.1} parent=35 // pred_check
          %p326 = pneg %p131
        $region46: #{tpu_custom_call.1} parent=35 // pred_check_branch
          %328 = sbr.rel (%p326) target = $region48
        $region47: #{tpu_custom_call.1} parent=35 // pred_region
          %329 = dma.done %s322, 128
        $region48: #{tpu_custom_call.1} parent=35 // pred_fallthru
          _
        %s330 = sand.u32 %s148, 1
        %s331 = scalar_lea.sflag [#allocation9], %s330
        %s332 = sand.u32 %s148, 1
        %s333 = smul.addr %s332, 8
        %s334 = scalar_lea.vmem [#allocation8], %s333
        // Predicated region
        $region49: #{tpu_custom_call.1} parent=35 // pred_check
          %p335 = pneg %p161
        $region50: #{tpu_custom_call.1} parent=35 // pred_check_branch
          %337 = sbr.rel (%p335) target = $region52
        $region51: #{tpu_custom_call.1} parent=35 // pred_region
          %338 = dma.done %s331, 128
        $region52: #{tpu_custom_call.1} parent=35 // pred_fallthru
          _
        %s339 = sand.u32 %s58, 1
        %s340 = scalar_lea.sflag [#allocation3], %s339
        %s341 = sand.u32 %s58, 1
        %s342 = smul.addr %s341, 64
        %s343 = scalar_lea.vmem [#allocation2], %s342
        %p344 = pneg %p71
        %p345 = pneg %p68
        %s346 = sand.u32 %s27, 1
        %s347 = scalar_lea.sflag [#allocation6], %s346
        %s348 = sand.u32 %s88, 1
        %s349 = smul.addr %s348, 64
        %s350 = scalar_lea.vmem [#allocation5], %s349
        %p351 = pneg %p101
        %p352 = pneg %p98
        %s353 = sand.u32 %s27, 1
        %s354 = scalar_lea.sflag [#allocation6], %s353
        %s355 = sand.u32 %s118, 1
        %s356 = smul.addr %s355, 8
        %s357 = scalar_lea.vmem [#allocation7], %s356
        %p358 = pneg %p131
        %p359 = pneg %p128
        %s360 = sand.u32 %s148, 1
        %s361 = scalar_lea.sflag [#allocation9], %s360
        %s362 = sand.u32 %s148, 1
        %s363 = smul.addr %s362, 8
        %s364 = scalar_lea.vmem [#allocation8], %s363
        %p365 = pneg %p161
        %p366 = pneg %p158
        %p367 = pneg %p189
        %p368 = pneg %p186
        %s369 = sand.u32 %s176, 1
        %s370 = scalar_lea.sflag [#allocation4], %s369
        %s371 = sand.u32 %s176, 1
        %s372 = smul.addr %s371, 48
        %s373 = scalar_lea.vmem [#allocation10], %s372
        %p374 = scmp.eq.s32.totalorder %s34, 0
        // Predicated region
        $region53: #{tpu_custom_call.1} parent=35 // pred_check
          %p375 = pneg %p374
        $region54: #{tpu_custom_call.1} parent=35 // pred_check_branch
          %377 = sbr.rel (%p375) target = $region56
        $region55: #{tpu_custom_call.1} parent=35 // pred_region
          %378 = vst [vmem:[%s373] sm:$0xff] 0.0
          %379 = vst [vmem:[%s373 + $0x8] sm:$0xff] 0.0
          %380 = vst [vmem:[%s373 + $0x10] sm:$0xff] 0.0
          %381 = vst [vmem:[%s373 + $0x18] sm:$0xff] 0.0
          %382 = vst [vmem:[%s373 + $0x20] sm:$0xff] 0.0
          %383 = vst [vmem:[%s373 + $0x28] sm:$0xff] 0.0
        $region56: #{tpu_custom_call.1} parent=35 // pred_fallthru
          _
        %v384 = vld [vmem:[%s307] sm:$0xff]
        %v385 = vld [vmem:[%s307 + $0x8] sm:$0xff]
        %v386 = vld [vmem:[%s307 + $0x10] sm:$0xff]
        %v387 = vld [vmem:[%s307 + $0x18] sm:$0xff]
        %v388 = vld [vmem:[%s307 + $0x20] sm:$0xff]
        %v389 = vld [vmem:[%s307 + $0x28] sm:$0xff]
        %v390 = vld [vmem:[%s307 + $0x30] sm:$0xff]
        %v391 = vld [vmem:[%s307 + $0x38] sm:$0xff]
        %v392 = vld [vmem:[%s316] sm:$0xff]
        %v393 = vld [vmem:[%s316 + $0x8] sm:$0xff]
        %v394 = vld [vmem:[%s316 + $0x10] sm:$0xff]
        %v395 = vld [vmem:[%s316 + $0x18] sm:$0xff]
        %v396 = vld [vmem:[%s316 + $0x20] sm:$0xff]
        %v397 = vld [vmem:[%s316 + $0x28] sm:$0xff]
        %v398 = vld [vmem:[%s316 + $0x30] sm:$0xff]
        %v399 = vld [vmem:[%s316 + $0x38] sm:$0xff]
        %v400 = vld [vmem:[%s325] sm:$0xff]
        %vm401 = vcmp.ne.s32.totalorder %v400, 255
        %v402 = vsel %vm401, 1, 0
        %v403 = vcvt.s32.f32 %v402
        %vm404 = vcmp.eq.s32.totalorder %v400, 0
        %vm405 = vcmp.eq.s32.totalorder %v400, 1
        %vm406 = vcmp.eq.s32.totalorder %v400, 2
        %vm407 = vcmp.eq.s32.totalorder %v400, 3
        %vm408 = vcmp.eq.s32.totalorder %v400, 4
        %vm409 = vcmp.eq.s32.totalorder %v400, 5
        %vm410 = vcmp.eq.s32.totalorder %v400, 6
        %vm411 = vcmp.eq.s32.totalorder %v400, 7
        %v412 = vmax.f32 %v384, %v388
        %v413 = vmax.f32 %v385, %v389
        %v414 = vmax.f32 %v386, %v390
        %v415 = vmax.f32 %v387, %v391
        %v416 = vmax.f32 %v412, %v413
        %v417 = vmax.f32 %v414, %v415
        %v418 = vmax.f32 %v416, %v417
        %v419 = vsub.f32 %v384, %v418
        %v420 = vsub.f32 %v385, %v418
        %v421 = vsub.f32 %v386, %v418
        %v422 = vsub.f32 %v387, %v418
        %v423 = vsub.f32 %v388, %v418
        %v424 = vsub.f32 %v389, %v418
        %v425 = vsub.f32 %v390, %v418
        %v426 = vsub.f32 %v391, %v418
        %v427 = vmul.f32 %v419, 1.442695
        %v428 = vpow.pop %v427
        %v429 = vmul.f32 %v420, 1.442695
        %v430 = vpow.pop %v429
        %v431 = vmul.f32 %v421, 1.442695
        %v432 = vpow.pop %v431
        %v433 = vmul.f32 %v422, 1.442695
        %v434 = vpow.pop %v433
        %v435 = vmul.f32 %v423, 1.442695
        %v436 = vpow.pop %v435
        %v437 = vmul.f32 %v424, 1.442695
        %v438 = vpow.pop %v437
        %v439 = vmul.f32 %v425, 1.442695
        %v440 = vpow.pop %v439
        %v441 = vmul.f32 %v426, 1.442695
        %v442 = vpow.pop %v441
        %v443 = vadd.f32 %v428, %v430
        %v444 = vadd.f32 %v443, %v432
        %v445 = vadd.f32 %v444, %v434
        %v446 = vadd.f32 %v445, %v436
        %v447 = vadd.f32 %v446, %v438
        %v448 = vadd.f32 %v447, %v440
        %v449 = vadd.f32 %v448, %v442
        %v450 = vsel %vm404, %v384, 0.0
        %v451 = vsel %vm405, %v385, 0.0
        %v452 = vsel %vm406, %v386, 0.0
        %v453 = vsel %vm407, %v387, 0.0
        %v454 = vsel %vm408, %v388, 0.0
        %v455 = vsel %vm409, %v389, 0.0
        %v456 = vsel %vm410, %v390, 0.0
        %v457 = vsel %vm411, %v391, 0.0
        %v458 = vadd.f32 %v450, %v451
        %v459 = vadd.f32 %v458, %v452
        %v460 = vadd.f32 %v459, %v453
        %v461 = vadd.f32 %v460, %v454
        %v462 = vadd.f32 %v461, %v455
        %v463 = vadd.f32 %v462, %v456
        %v464 = vadd.f32 %v463, %v457
        %v465 = vlog2.pop %v449
        %v466 = vmul.f32 %v465, 0.6931472
        %v467 = vadd.f32 %v418, %v466
        %v468 = vsub.f32 %v467, %v464
        %v469 = vsel %vm401, %v468, 0.0
        %v470 = vmax.f32 %v392, %v396
        %v471 = vmax.f32 %v393, %v397
        %v472 = vmax.f32 %v394, %v398
        %v473 = vmax.f32 %v395, %v399
        %v474 = vmax.f32 %v470, %v471
        %v475 = vmax.f32 %v472, %v473
        %v476 = vmax.f32 %v474, %v475
        %v477 = vsub.f32 %v392, %v476
        %v478 = vsub.f32 %v393, %v476
        %v479 = vsub.f32 %v394, %v476
        %v480 = vsub.f32 %v395, %v476
        %v481 = vsub.f32 %v396, %v476
        %v482 = vsub.f32 %v397, %v476
        %v483 = vsub.f32 %v398, %v476
        %v484 = vsub.f32 %v399, %v476
        %v485 = vmul.f32 %v477, 1.442695
        %v486 = vpow.pop %v485
        %v487 = vmul.f32 %v478, 1.442695
        %v488 = vpow.pop %v487
        %v489 = vmul.f32 %v479, 1.442695
        %v490 = vpow.pop %v489
        %v491 = vmul.f32 %v480, 1.442695
        %v492 = vpow.pop %v491
        %v493 = vmul.f32 %v481, 1.442695
        %v494 = vpow.pop %v493
        %v495 = vmul.f32 %v482, 1.442695
        %v496 = vpow.pop %v495
        %v497 = vmul.f32 %v483, 1.442695
        %v498 = vpow.pop %v497
        %v499 = vmul.f32 %v484, 1.442695
        %v500 = vpow.pop %v499
        %v501 = vadd.f32 %v486, %v488
        %v502 = vadd.f32 %v501, %v490
        %v503 = vadd.f32 %v502, %v492
        %v504 = vadd.f32 %v503, %v494
        %v505 = vadd.f32 %v504, %v496
        %v506 = vadd.f32 %v505, %v498
        %v507 = vadd.f32 %v506, %v500
        %v508 = vsel %vm404, %v392, 0.0
        %v509 = vsel %vm405, %v393, 0.0
        %v510 = vsel %vm406, %v394, 0.0
        %v511 = vsel %vm407, %v395, 0.0
        %v512 = vsel %vm408, %v396, 0.0
        %v513 = vsel %vm409, %v397, 0.0
        %v514 = vsel %vm410, %v398, 0.0
        %v515 = vsel %vm411, %v399, 0.0
        %v516 = vadd.f32 %v508, %v509
        %v517 = vadd.f32 %v516, %v510
        %v518 = vadd.f32 %v517, %v511
        %v519 = vadd.f32 %v518, %v512
        %v520 = vadd.f32 %v519, %v513
        %v521 = vadd.f32 %v520, %v514
        %v522 = vadd.f32 %v521, %v515
        %v523 = vlog2.pop %v507
        %v524 = vmul.f32 %v523, 0.6931472
        %v525 = vadd.f32 %v476, %v524
        %v526 = vsub.f32 %v525, %v522
        %v527 = vsel %vm401, %v526, 0.0
        %vm528 = vcmp.eq.f32.partialorder %v384, %v418
        %vm529 = vcmp.eq.f32.partialorder %v385, %v418
        %vm530 = vcmp.eq.f32.partialorder %v386, %v418
        %vm531 = vcmp.eq.f32.partialorder %v387, %v418
        %vm532 = vcmp.eq.f32.partialorder %v388, %v418
        %vm533 = vcmp.eq.f32.partialorder %v389, %v418
        %vm534 = vcmp.eq.f32.partialorder %v390, %v418
        %vm535 = vcmp.eq.f32.partialorder %v391, %v418
        %v536 = vsel %vm528, 1, 0
        %v537 = vsel %vm529, 1, 0
        %v538 = vsel %vm530, 1, 0
        %v539 = vsel %vm531, 1, 0
        %v540 = vsel %vm532, 1, 0
        %v541 = vsel %vm533, 1, 0
        %v542 = vsel %vm534, 1, 0
        %v543 = vsel %vm535, 1, 0
        %v544 = vadd.s32 %v536, %v540
        %v545 = vadd.s32 %v537, %v541
        %v546 = vadd.s32 %v538, %v542
        %v547 = vadd.s32 %v539, %v543
        %v548 = vadd.s32 %v544, %v545
        %v549 = vadd.s32 %v546, %v547
        %v550 = vadd.s32 %v548, %v549
        %v551 = vsel %vm528, -inf, %v384
        %v552 = vsel %vm529, -inf, %v385
        %v553 = vsel %vm530, -inf, %v386
        %v554 = vsel %vm531, -inf, %v387
        %v555 = vsel %vm532, -inf, %v388
        %v556 = vsel %vm533, -inf, %v389
        %v557 = vsel %vm534, -inf, %v390
        %v558 = vsel %vm535, -inf, %v391
        %v559 = vmax.f32 %v551, %v555
        %v560 = vmax.f32 %v552, %v556
        %v561 = vmax.f32 %v553, %v557
        %v562 = vmax.f32 %v554, %v558
        %v563 = vmax.f32 %v559, %v560
        %v564 = vmax.f32 %v561, %v562
        %v565 = vmax.f32 %v563, %v564
        %vm566 = vcmp.gt.s32.totalorder %v550, 1
        %v567 = vsel %vm566, %v418, %v565
        %v568 = vsub.f32 %v567, %v418
        %v569 = vmul.f32 %v568, 1.442695
        %v570 = vpow.pop %v569
        %v571 = vsub.f32 1.0, %v570
        %v572 = vrcp.pop %v449
        %v573 = vmul.f32 %v571, %v572
        %v574 = vsub.f32 1.0, %v573
        %v575 = vmul.f32 %v574, 9.0
        %v576 = vadd.f32 %v575, 1.0
        %v577 = vld [vmem:[%s334] sm:$0xff]
        %v578 = vmul.f32 %v576, %v577
        %v579 = vsel %vm401, %v578, 0.0
        %v580 = vld [vmem:[%s373] sm:$0xff]
        %v581 = vadd.f32 %v580, %v469
        %582 = vst [vmem:[%s373] sm:$0xff] %v581
        %s583 = scalar_lea.vmem %s373, 8 [#allocation10]
        %v584 = vld [vmem:[%s583] sm:$0xff]
        %v585 = vadd.f32 %v584, %v527
        %586 = vst [vmem:[%s583] sm:$0xff] %v585
        %s587 = scalar_lea.vmem %s373, 16 [#allocation10]
        %v588 = vld [vmem:[%s587] sm:$0xff]
        %v589 = vadd.f32 %v588, %v403
        %590 = vst [vmem:[%s587] sm:$0xff] %v589
        %s591 = scalar_lea.vmem %s373, 24 [#allocation10]
        %v592 = vld [vmem:[%s591] sm:$0xff]
        %v593 = vmul.f32 %v469, %v579
        %v594 = vadd.f32 %v592, %v593
        %595 = vst [vmem:[%s591] sm:$0xff] %v594
        %s596 = scalar_lea.vmem %s373, 32 [#allocation10]
        %v597 = vld [vmem:[%s596] sm:$0xff]
        %v598 = vmul.f32 %v527, %v579
        %v599 = vadd.f32 %v597, %v598
        %600 = vst [vmem:[%s596] sm:$0xff] %v599
        %s601 = scalar_lea.vmem %s373, 40 [#allocation10]
        %v602 = vld [vmem:[%s601] sm:$0xff]
        %v603 = vadd.f32 %v602, %v579
        %604 = vst [vmem:[%s601] sm:$0xff] %v603
        %s605 = sand.u32 %s176, 1
        %s606 = scalar_lea.sflag [#allocation4], %s605
        %s607 = sand.u32 %s176, 1
        %s608 = smul.addr %s607, 48
        %s609 = scalar_lea.vmem [#allocation10], %s608
        // Predicated region
        $region57: #{tpu_custom_call.1} parent=35 // pred_check
          %p610 = pneg %p186
        $region58: #{tpu_custom_call.1} parent=35 // pred_check_branch
          %612 = sbr.rel (%p610) target = $region60
        $region59: #{tpu_custom_call.1} parent=35 // pred_region
          %s614 = ssub.s32 768, 768
          %615 = vsyncadd %s606, %s614
          %s616 = smul.addr %s32, 6
          %s617 = sadd.s32 %s33, %s616
          %s618 = smul.addr %s617, 128
          %s619 = scalar_lea.hbm %s4, %s618
          %s620 = sshll.u32 %s609, 4
          %s621 = int_to_ptr.vmem [resolvable:$true] %s620
          %626 = dma.vmem_to_hbm [thread:$0]  %s621, 768, %s619, %s606, 128, 128, 8
        $region60: #{tpu_custom_call.1} parent=35 // pred_fallthru
          _
      $region36: #{tpu_custom_call.1} parent=5 // pred_fallthru
        _
      %p627 = scmp.le.s32.totalorder 2, %s22
      // Predicated region
      $region61: #{tpu_custom_call.1} parent=5 // pred_check
        %p628 = pneg %p627
      $region62: #{tpu_custom_call.1} parent=5 // pred_check_branch
        %630 = sbr.rel (%p628) target = $region64
      $region63: #{tpu_custom_call.1} parent=5 // pred_region
        %s631 = ssub.s32 %s22, 2
        // Predicated region
        $region65: #{tpu_custom_call.1} parent=63 // pred_check
          %p632 = pneg %p192
        $region66: #{tpu_custom_call.1} parent=63 // pred_check_branch
          %634 = sbr.rel (%p632) target = $region68
        $region67: #{tpu_custom_call.1} parent=63 // pred_region
          %s635 = sand.u32 %s177, 1
          %s636 = scalar_lea.sflag [#allocation4], %s635
          %s637 = sand.u32 %s177, 1
          %s638 = smul.addr %s637, 48
          %s639 = scalar_lea.vmem [#allocation10], %s638
          %640 = dma.done %s636, 768
        $region68: #{tpu_custom_call.1} parent=63 // pred_fallthru
          _
      $region64: #{tpu_custom_call.1} parent=5 // pred_fallthru
        _
    $region6: #{tpu_custom_call.1} parent=1 // loop_footer
      %s26 = sadd.s32 1, %s22
    $region7: #{tpu_custom_call.1} parent=1 // loop_footer_branch
      %21 = sbr.rel target = $region3
    $region8: #{tpu_custom_call.1} parent=1 // loop_exit
      _
    %641 = vsyncpa [#allocation3], 1
    %s642 = scalar_lea.sflag [#allocation3], 1
    %643 = vsyncpa %s642, 1
    %644 = vsyncpa [#allocation6], 1
    %s645 = scalar_lea.sflag [#allocation6], 1
    %646 = vsyncpa %s645, 1
    %647 = vsyncpa [#allocation9], 1
    %s648 = scalar_lea.sflag [#allocation9], 1
    %649 = vsyncpa %s648, 1
    %650 = vsyncpa [#allocation4], 1
    %s651 = scalar_lea.sflag [#allocation4], 1
    %652 = vsyncpa %s651, 1

</llo_original>
